<compile_context>
chip_gen: v6e
topology: v6e:2x2x1
jax: 0.10.0
libtpu: 0.0.40
codegen_flags: <defaults>
</compile_context>

<pallas_src>
import functools
import math

import jax
import jax.numpy as jnp
from jax.experimental import pallas as pl
from jax.experimental.pallas import tpu as pltpu


_DB_CONST = 10.0 / math.log(10.0)   # 10*log10(x) == _DB_CONST * ln(x)
_AMIN = 1e-10                       # torchaudio AmplitudeToDB clamp floor


def _round_up(x, m):
    return ((x + m - 1) // m) * m


def _default_compute_dtype():
    """bf16 matmul inputs on bf16-native MXUs (v6e/v7x), f32 elsewhere (v5e/v4)."""
    try:
        kind = jax.devices()[0].device_kind.lower()
    except Exception:
        return jnp.float32
    if any(tag in kind for tag in ("v6", "v7", "7x")):
        return jnp.bfloat16
    return jnp.float32


# ----------------------------------------------------------------------------
# Parameter / basis construction (deterministic, plain JAX, float32)
# ----------------------------------------------------------------------------
def _hz_to_mel_htk(f):
    return 2595.0 * jnp.log10(1.0 + f / 700.0)


def _mel_to_hz_htk(m):
    return 700.0 * (10.0 ** (m / 2595.0) - 1.0)


def make_mel_filterbank(sr, n_fft, n_mels):
    """Replicates torchaudio.functional.melscale_fbanks (htk, norm=None)."""
    n_freqs = n_fft // 2 + 1
    f_min, f_max = 0.0, sr / 2.0
    all_freqs = jnp.linspace(0.0, sr / 2.0, n_freqs)
    m_min = _hz_to_mel_htk(jnp.asarray(f_min))
    m_max = _hz_to_mel_htk(jnp.asarray(f_max))
    m_pts = jnp.linspace(m_min, m_max, n_mels + 2)
    f_pts = _mel_to_hz_htk(m_pts)
    f_diff = f_pts[1:] - f_pts[:-1]                       # (n_mels + 1,)
    slopes = f_pts[None, :] - all_freqs[:, None]          # (n_freqs, n_mels + 2)
    down = -slopes[:, :-2] / f_diff[:-1]
    up = slopes[:, 2:] / f_diff[1:]
    fb = jnp.maximum(0.0, jnp.minimum(down, up))          # (n_freqs, n_mels)
    return fb.astype(jnp.float32)


def make_dft_bases(n_fft):
    """Windowed real-DFT bases; window is periodic Hann (torch default)."""
    n_freqs = n_fft // 2 + 1
    n = jnp.arange(n_fft, dtype=jnp.float32)
    window = 0.5 - 0.5 * jnp.cos(2.0 * jnp.pi * n / n_fft)        # periodic Hann
    k = jnp.arange(n_freqs, dtype=jnp.float32)
    ang = 2.0 * jnp.pi * n[:, None] * k[None, :] / n_fft          # (n_fft, n_freqs)
    cos_b = (jnp.cos(ang) * window[:, None]).astype(jnp.float32)
    sin_b = (jnp.sin(ang) * window[:, None]).astype(jnp.float32)
    return cos_b, sin_b


# ----------------------------------------------------------------------------
# Pallas kernel: (resident hop-reshaped audio) -> log-mel frame tile
# ----------------------------------------------------------------------------
def _logmel_kernel(xr_ref, basis_ref, melfb_ref, out_ref, *,
                   hop, n_fft, tf, kf, compute_dtype):
    # xr_ref:    (1, rows_total, hop)  reflect+zero padded audio, hop samples/row, f32
    # basis_ref: (n_fft, 2*kf)         fused windowed [cos | sin] DFT basis
    # melfb_ref: (kf, n_mels)          zero-padded HTK mel filterbank
    # out_ref:   (1, tf, n_mels)       log-mel rows for this frame tile
    t = pl.program_id(1)
    start = pl.multiple_of(t * tf, 8)         # tf is a multiple of 8

    # Build the (tf, n_fft) frame tile in VMEM from hop-wide audio rows:
    #   frame f = [ xr[f] | xr[f+1] | ... | xr[f+n_full-1] | xr[f+n_full][:rem] ]
    n_full, rem = divmod(n_fft, hop)
    pieces = [xr_ref[0, pl.ds(start + j, tf), :] for j in range(n_full)]
    if rem:
        pieces.append(xr_ref[0, pl.ds(start + n_full, tf), :rem])
    frames = pieces[0] if len(pieces) == 1 else jnp.concatenate(pieces, axis=-1)
    frames = frames.astype(compute_dtype)                       # (tf, n_fft)

    # Windowed real DFT: cos and sin fused into one MXU matmul, f32 accumulate.
    y = jnp.dot(frames, basis_ref[...], preferred_element_type=jnp.float32)
    re = y[:, :kf]                                              # (tf, kf)
    im = y[:, kf:]                                              # (tf, kf)
    power = re * re + im * im                                   # f32, padded cols = 0

    # Mel projection (padded frequency rows of the filterbank are zero).
    mel = jnp.dot(power.astype(compute_dtype), melfb_ref[...],
                  preferred_element_type=jnp.float32)           # (tf, n_mels)

    # AmplitudeToDB (stype="power", ref=1.0, top_db=None).
    out_ref[0] = _DB_CONST * jnp.log(jnp.maximum(mel, _AMIN))


def _logmel_pallas(xr, basis, mel_fb, *, n_frames_padded, tf, hop, n_fft, kf,
                   compute_dtype):
    B, rows_total, _ = xr.shape
    n_mels = mel_fb.shape[1]
    n_tiles = n_frames_padded // tf
    kernel = functools.partial(
        _logmel_kernel, hop=hop, n_fft=n_fft, tf=tf, kf=kf,
        compute_dtype=compute_dtype)
    return pl.pallas_call(
        kernel,
        out_shape=jax.ShapeDtypeStruct((B, n_frames_padded, n_mels), jnp.float32),
        grid_spec=pltpu.PrefetchScalarGridSpec(
            num_scalar_prefetch=0,
            grid=(B, n_tiles),
            in_specs=[
                # Whole (hop-reshaped) clip for batch b; resident across frame tiles.
                pl.BlockSpec((1, rows_total, hop), lambda b, t: (b, 0, 0)),
                # Constant bases: fetched once, resident for the whole grid.
                pl.BlockSpec(basis.shape, lambda b, t: (0, 0)),
                pl.BlockSpec(mel_fb.shape, lambda b, t: (0, 0)),
            ],
            out_specs=pl.BlockSpec((1, tf, n_mels), lambda b, t: (b, t, 0)),
        ),
        compiler_params=pltpu.CompilerParams(
            dimension_semantics=("parallel", "parallel")),
    )(xr, basis, mel_fb)


# ----------------------------------------------------------------------------
# Module wrapper
# ----------------------------------------------------------------------------
class Audio2LogMelSpec:
    """JAX/Pallas port of the PyTorch Audio2LogMelSpec (MelSpectrogram + AmplitudeToDB)."""

    def __init__(self, sr: int, n_fft: int, hop_length: int, n_mels: int = 128,
                 frame_tile: int = 512, compute_dtype=None):
        assert n_fft % 2 == 0, "even n_fft assumed (matches torchaudio defaults)"
        self.sr = sr
        self.n_fft = n_fft
        self.hop_length = hop_length
        self.n_mels = n_mels
        self.frame_tile = max(8, _round_up(int(frame_tile), 8))
        self.compute_dtype = (_default_compute_dtype() if compute_dtype is None
                              else compute_dtype)

        n_freqs = n_fft // 2 + 1
        self.kf = _round_up(n_freqs, 128)          # lane-aligned frequency axis
        cos_b, sin_b = make_dft_bases(n_fft)
        pad_f = self.kf - n_freqs
        cos_b = jnp.pad(cos_b, ((0, 0), (0, pad_f)))
        sin_b = jnp.pad(sin_b, ((0, 0), (0, pad_f)))
        # Fused [cos | sin] basis -> a single MXU matmul per frame tile.
        self.basis = jnp.concatenate([cos_b, sin_b], axis=1).astype(self.compute_dtype)
        mel_fb = make_mel_filterbank(sr, n_fft, n_mels)
        self.mel_fb = jnp.pad(mel_fb, ((0, pad_f), (0, 0))).astype(self.compute_dtype)

    @functools.partial(jax.jit, static_argnums=0)
    def __call__(self, x):
        # x: (B, L) float32
        B, L = x.shape
        hop, n_fft = self.hop_length, self.n_fft
        pad = n_fft // 2
        xp = jnp.pad(x, ((0, 0), (pad, pad)), mode="reflect")   # center=True STFT
        n_frames = 1 + L // hop

        # Frame tiling: big MXU-friendly tiles with minimal padding waste.
        n_tiles = pl.cdiv(n_frames, self.frame_tile)
        tf = _round_up(pl.cdiv(n_frames, n_tiles), 8)
        n_frames_padded = n_tiles * tf

        # Hop-reshaped audio; frames are assembled inside the kernel from this,
        # so HBM traffic is ~1x the audio (no n_fft/hop framing blow-up).
        rows_total = n_frames_padded + pl.cdiv(n_fft, hop)
        xp = jnp.pad(xp, ((0, 0), (0, rows_total * hop - xp.shape[1])))
        xr = xp.reshape(B, rows_total, hop)

        out = _logmel_pallas(
            xr, self.basis, self.mel_fb,
            n_frames_padded=n_frames_padded, tf=tf, hop=hop, n_fft=n_fft,
            kf=self.kf, compute_dtype=self.compute_dtype)
        out = out[:, :n_frames, :]
        # (B, n_frames, n_mels) -> (B, n_mels, n_frames), PyTorch layout.
        # Kept in XLA: an in-kernel transpose is only worthwhile when tf >= 128
        # (lane-dense stores); small inputs would pay masked-store cost instead.
        return jnp.transpose(out, (0, 2, 1))


# ----------------------------------------------------------------------------
# Pure-JAX reference (for a numerics sanity check in __main__)
# ----------------------------------------------------------------------------
def _reference_logmel(x, sr, n_fft, hop, n_mels):
    pad = n_fft // 2
    xp = jnp.pad(x, ((0, 0), (pad, pad)), mode="reflect")
    n_frames = 1 + x.shape[1] // hop
    idx = jnp.arange(n_frames)[:, None] * hop + jnp.arange(n_fft)[None, :]
    frames = xp[:, idx]                                          # (B, T, n_fft)
    cos_b, sin_b = make_dft_bases(n_fft)
    hi = jax.lax.Precision.HIGHEST
    re = jnp.einsum("btn,nf->btf", frames, cos_b, precision=hi)
    im = jnp.einsum("btn,nf->btf", frames, sin_b, precision=hi)
    power = re * re + im * im
    mel = jnp.einsum("btf,fm->btm", power, make_mel_filterbank(sr, n_fft, n_mels),
                     precision=hi)
    db = 10.0 * jnp.log10(jnp.maximum(mel, _AMIN))
    return jnp.transpose(db, (0, 2, 1))


if __name__ == "__main__":
    sr, n_fft, hop_length = 16000, 256, 64
    B, L = 2, 1024

    key = jax.random.PRNGKey(0)
    x = jax.random.normal(key, (B, L), dtype=jnp.float32)

    # Device-tuned instance (bf16 matmul inputs on v6e/v7x, f32 on v5e and older).
    model = Audio2LogMelSpec(sr=sr, n_fft=n_fft, hop_length=hop_length)
    y = jax.block_until_ready(model(x))

    n_frames = 1 + L // hop_length
    assert y.shape == (B, model.n_mels, n_frames), y.shape
    assert y.dtype == jnp.float32
    assert bool(jnp.all(jnp.isfinite(y)))

    # Numerics sanity check with an f32 kernel instance vs. plain-JAX reference.
    model_f32 = Audio2LogMelSpec(sr=sr, n_fft=n_fft, hop_length=hop_length,
                                 compute_dtype=jnp.float32)
    y32 = jax.block_until_ready(model_f32(x))
    ref = _reference_logmel(x, sr, n_fft, hop_length, model.n_mels)
    diff = jnp.abs(y32 - ref)
    assert float(jnp.mean(diff)) < 0.1, float(jnp.mean(diff))
    assert float(jnp.max(diff)) < 5.0, float(jnp.max(diff))

    print("KERNEL_OK")
</pallas_src>

<mosaic_0001>
module attributes {stable_mosaic.version = 11 : i64} {
  func.func @_logmel_kernel(%arg0: i32, %arg1: i32, %arg2: memref<1x28x64xf32, #tpu.memory_space<vmem>>, %arg3: memref<256x512xf32, #tpu.memory_space<vmem>>, %arg4: memref<256x128xf32, #tpu.memory_space<vmem>>, %arg5: memref<1x24x128xf32, #tpu.memory_space<vmem>>) attributes {dimension_semantics = [#tpu.dimension_semantics<parallel>, #tpu.dimension_semantics<parallel>], iteration_bounds = array<i64: 2, 1>, scalar_prefetch = 0 : i64, scratch_operands = 0 : i64, tpu.core_type = #tpu.core_type<tc>, window_params = [{transform_indices = @transform_0, window_bounds = array<i64: 1, 28, 64>}, {pipeline_mode = #tpu.pipeline_mode<synchronous>, transform_indices = @transform_1, window_bounds = array<i64: 256, 512>}, {pipeline_mode = #tpu.pipeline_mode<synchronous>, transform_indices = @transform_2, window_bounds = array<i64: 256, 128>}, {transform_indices = @transform_3, window_bounds = array<i64: 1, 24, 128>}]} {
    %c24_i32 = arith.constant 24 : i32
    %0 = arith.muli %arg1, %c24_i32 : i32
    %1 = tpu.assume_multiple %0, 8 : i32
    %c0_i32 = arith.constant 0 : i32
    %2 = arith.addi %1, %c0_i32 : i32
    %c0 = arith.constant 0 : index
    %3 = arith.index_cast %2 : i32 to index
    %c0_0 = arith.constant 0 : index
    %4 = vector.load %arg2[%c0, %3, %c0_0] : memref<1x28x64xf32, #tpu.memory_space<vmem>>, vector<1x24x64xf32>
    %5 = vector.shape_cast %4 : vector<1x24x64xf32> to vector<24x64xf32>
    %c1_i32 = arith.constant 1 : i32
    %6 = arith.addi %1, %c1_i32 : i32
    %c0_1 = arith.constant 0 : index
    %7 = arith.index_cast %6 : i32 to index
    %c0_2 = arith.constant 0 : index
    %8 = vector.load %arg2[%c0_1, %7, %c0_2] : memref<1x28x64xf32, #tpu.memory_space<vmem>>, vector<1x24x64xf32>
    %9 = vector.shape_cast %8 : vector<1x24x64xf32> to vector<24x64xf32>
    %c2_i32 = arith.constant 2 : i32
    %10 = arith.addi %1, %c2_i32 : i32
    %c0_3 = arith.constant 0 : index
    %11 = arith.index_cast %10 : i32 to index
    %c0_4 = arith.constant 0 : index
    %12 = vector.load %arg2[%c0_3, %11, %c0_4] : memref<1x28x64xf32, #tpu.memory_space<vmem>>, vector<1x24x64xf32>
    %13 = vector.shape_cast %12 : vector<1x24x64xf32> to vector<24x64xf32>
    %c3_i32 = arith.constant 3 : i32
    %14 = arith.addi %1, %c3_i32 : i32
    %c0_5 = arith.constant 0 : index
    %15 = arith.index_cast %14 : i32 to index
    %c0_6 = arith.constant 0 : index
    %16 = vector.load %arg2[%c0_5, %15, %c0_6] : memref<1x28x64xf32, #tpu.memory_space<vmem>>, vector<1x24x64xf32>
    %17 = vector.shape_cast %16 : vector<1x24x64xf32> to vector<24x64xf32>
    %18 = tpu.concatenate %5, %9, %13, %17 in 1 : vector<24x64xf32>, vector<24x64xf32>, vector<24x64xf32>, vector<24x64xf32> -> vector<24x256xf32>
    %c0_7 = arith.constant 0 : index
    %c0_8 = arith.constant 0 : index
    %19 = vector.load %arg3[%c0_7, %c0_8] : memref<256x512xf32, #tpu.memory_space<vmem>>, vector<256x512xf32>
    %cst = arith.constant dense<0.000000e+00> : vector<24x512xf32>
    %20 = tpu.matmul %18, %19, %cst {dimension_numbers = #tpu.dot_dimension_numbers<[1], [0], [0], [1], [0, 0, 1, 1], [], []>} : vector<24x256xf32>, vector<256x512xf32>, vector<24x512xf32> -> vector<24x512xf32>
    %21 = vector.extract_strided_slice %20 {offsets = [0, 0], sizes = [24, 256], strides = [1, 1]} : vector<24x512xf32> to vector<24x256xf32>
    %22 = vector.extract_strided_slice %20 {offsets = [0, 256], sizes = [24, 256], strides = [1, 1]} : vector<24x512xf32> to vector<24x256xf32>
    %23 = arith.mulf %21, %21 : vector<24x256xf32>
    %24 = arith.mulf %22, %22 : vector<24x256xf32>
    %25 = arith.addf %23, %24 : vector<24x256xf32>
    %c0_9 = arith.constant 0 : index
    %c0_10 = arith.constant 0 : index
    %26 = vector.load %arg4[%c0_9, %c0_10] : memref<256x128xf32, #tpu.memory_space<vmem>>, vector<256x128xf32>
    %cst_11 = arith.constant dense<0.000000e+00> : vector<24x128xf32>
    %27 = tpu.matmul %25, %26, %cst_11 {dimension_numbers = #tpu.dot_dimension_numbers<[1], [0], [0], [1], [0, 0, 1, 1], [], []>} : vector<24x256xf32>, vector<256x128xf32>, vector<24x128xf32> -> vector<24x128xf32>
    %cst_12 = arith.constant 1.000000e-10 : f32
    %28 = vector.broadcast %cst_12 : f32 to vector<24x128xf32>
    %29 = arith.maximumf %27, %28 : vector<24x128xf32>
    %30 = math.log %29 : vector<24x128xf32>
    %cst_13 = arith.constant 4.34294462 : f32
    %31 = vector.broadcast %cst_13 : f32 to vector<24x128xf32>
    %32 = arith.mulf %31, %30 : vector<24x128xf32>
    %c0_14 = arith.constant 0 : index
    %c0_15 = arith.constant 0 : index
    %c0_16 = arith.constant 0 : index
    %33 = vector.load %arg5[%c0_14, %c0_15, %c0_16] : memref<1x24x128xf32, #tpu.memory_space<vmem>>, vector<1x24x128xf32>
    %34 = vector.shape_cast %33 : vector<1x24x128xf32> to vector<24x128xf32>
    %35 = vector.shape_cast %32 : vector<24x128xf32> to vector<1x24x128xf32>
    tpu.vector_store %arg5[%c0_14, %c0_15, %c0_16], %35 {strides = array<i32>} : memref<1x24x128xf32, #tpu.memory_space<vmem>>, vector<1x24x128xf32>,
    return
  }
  func.func @transform_0(%arg0: i32, %arg1: i32) -> (i32, i32, i32) {
    %c0_i32 = arith.constant 0 : i32
    %c0_i32_0 = arith.constant 0 : i32
    %c0_i32_1 = arith.constant 0 : i32
    return %arg0, %c0_i32, %c0_i32_0 : i32, i32, i32
  }
  func.func @transform_1(%arg0: i32, %arg1: i32) -> (i32, i32) {
    %c0_i32 = arith.constant 0 : i32
    %c0_i32_0 = arith.constant 0 : i32
    %c0_i32_1 = arith.constant 0 : i32
    return %c0_i32, %c0_i32_0 : i32, i32
  }
  func.func @transform_2(%arg0: i32, %arg1: i32) -> (i32, i32) {
    %c0_i32 = arith.constant 0 : i32
    %c0_i32_0 = arith.constant 0 : i32
    %c0_i32_1 = arith.constant 0 : i32
    return %c0_i32, %c0_i32_0 : i32, i32
  }
  func.func @transform_3(%arg0: i32, %arg1: i32) -> (i32, i32, i32) {
    %c0_i32 = arith.constant 0 : i32
    %c0_i32_0 = arith.constant 0 : i32
    return %arg0, %arg1, %c0_i32 : i32, i32, i32
  }
}

</mosaic_0001>

<llo_original>
// kernel: a_call__.1
$region0: #{a_call__.1}
  #allocation0 [shape = 'u32[]', space=smem, size = 0x4, offset = 0x4, fixed_abs, tag = 'smem constant byte address 0x4 - core index']
  #allocation1 [shape = 'u32[144,128]{1,0:T(1,128)}', space=vmem, size = 0x12000, scoped, tag = 'internal scratch']
  %s0 = inlined_call_operand.vmem [shape: f32[2,28,64], index: 0, kind: input, shape index: {}]
  %s1 = inlined_call_operand.hbm [shape: f32[256,512], index: 1, kind: input, shape index: {}]
  %s2 = inlined_call_operand.hbm [shape: f32[256,128], index: 2, kind: input, shape index: {}]
  %s3 = inlined_call_operand.vmem [shape: f32[2,24,128], index: 3, kind: output, shape index: {}]
  %s4 = sld [smem:[#allocation0]]
  $region53: #{a_call__.1} parent=0
    _
  %s6 = ssub.s32 1, %s4
  %s7 = scalar_select 0, %s6, %s4
  $region1: #{a_call__.1} parent=0
    #allocation2 [shape = 'u8[524288]{0}', space=vmem, size = 0x80000, scoped, tag = 'input window, operand 1, single buffered']
    #allocation3 [shape = 's32[2]{0}', space=sflag, size = 0x8, scoped, tag = 'scoped memory for a_call__.1']
    #allocation4 [shape = 'u8[131072]{0}', space=vmem, size = 0x20000, scoped, tag = 'input window, operand 2, single buffered']
    #allocation5 [shape = 's32[1]{0}', space=sflag, size = 0x4, scoped, tag = 'scoped memory for a_call__.1']
    %8 = vsyncpa [#allocation3], 0
    %9 = vsyncpa [#allocation5], 0
    loop: start=0, step=1, limit=4
    $region2: #{a_call__.1} parent=1 // loop_pre_header
      _
    $region3: #{a_call__.1} parent=1 // loop_header
      %s11 = sphi 0, %s15
      %p12 = scmp.ge.s32.totalorder %s11, 4
      %s18 = sphi 0, %s30
      %s19 = sphi 0, %s26
      %s20 = sphi 0, %s18
      %s21 = sphi 0, %s19
      %s22 = sphi 0, %s20
      %s23 = sphi 0, %s21
      %s33 = sphi 0, %s35
      %s36 = sphi 0, %s33
      %s37 = sphi 0, %s36
      %s53 = sphi 0, %s37
      %s57 = sphi 0, %s57
      %s59 = sphi 0, %s57
      %s60 = sphi 0, %s59
      %s74 = sphi 0, %s60
      %s78 = sphi 0, %s78
      %s80 = sphi 0, %s78
      %s81 = sphi 0, %s80
      %s95 = sphi 0, %s81
      %s103 = sphi 0, %s105
      %s106 = sphi 0, %s103
      %s107 = sphi 0, %s106
      %s123 = sphi 0, %s107
    $region4: #{a_call__.1} parent=1 // loop_header_branch
      %14 = sbr.rel (%p12) target = $region8
    $region5: #{a_call__.1} parent=1 // loop_body
      %s16 = ssub.s32 %s11, 1
      %s17 = ssub.s32 %s11, 2
      %s24 = sadd.s32 1, %s19
      %p25 = scmp.ge.s32.totalorder %s24, 1
      %s26 = scalar_select %p25, 0, %s24
      %s27 = sadd.s32 1, %s18
      %s28 = scalar_select %p25, %s27, %s18
      %p29 = scmp.ge.s32.totalorder %s28, 2
      %s30 = scalar_select %p29, 0, %s28
      %s31 = ssub.s32 %s18, %s30
      %p32 = scmp.eq.s32.totalorder %s31, 0
      %s34 = sadd.s32 %s33, 1
      %s35 = scalar_select %p32, %s33, %s34
      %p38 = pneg %p32
      %p39 = scmp.eq.s32.totalorder %s11, 1
      %p40 = por %p38, %p39
      %p41 = scmp.ne.s32.totalorder %s33, %s36
      %p42 = scmp.eq.s32.totalorder %s11, 0
      %p43 = por %p41, %p42
      %p44 = scmp.ne.s32.totalorder %s33, %s36
      %p45 = scmp.eq.s32.totalorder %s16, 1
      %p46 = por %p44, %p45
      %p47 = scmp.ne.s32.totalorder %s36, %s37
      %p48 = scmp.eq.s32.totalorder %s16, 0
      %p49 = por %p47, %p48
      %p50 = scmp.ne.s32.totalorder %s36, %s37
      %p51 = scmp.eq.s32.totalorder %s17, 1
      %p52 = por %p50, %p51
      %p54 = scmp.ne.s32.totalorder %s37, %s53
      %p55 = scmp.eq.s32.totalorder %s17, 0
      %p56 = por %p54, %p55
      %s58 = sadd.s32 %s57, 1
      %p61 = scmp.eq.s32.totalorder %s11, 1
      %p62 = scmp.ne.s32.totalorder %s57, %s59
      %p63 = scmp.eq.s32.totalorder %s11, 0
      %p64 = por %p62, %p63
      %p65 = scmp.ne.s32.totalorder %s57, %s59
      %p66 = scmp.eq.s32.totalorder %s16, 1
      %p67 = por %p65, %p66
      %p68 = scmp.ne.s32.totalorder %s59, %s60
      %p69 = scmp.eq.s32.totalorder %s16, 0
      %p70 = por %p68, %p69
      %p71 = scmp.ne.s32.totalorder %s59, %s60
      %p72 = scmp.eq.s32.totalorder %s17, 1
      %p73 = por %p71, %p72
      %p75 = scmp.ne.s32.totalorder %s60, %s74
      %p76 = scmp.eq.s32.totalorder %s17, 0
      %p77 = por %p75, %p76
      %s79 = sadd.s32 %s78, 1
      %p82 = scmp.eq.s32.totalorder %s11, 1
      %p83 = scmp.ne.s32.totalorder %s78, %s80
      %p84 = scmp.eq.s32.totalorder %s11, 0
      %p85 = por %p83, %p84
      %p86 = scmp.ne.s32.totalorder %s78, %s80
      %p87 = scmp.eq.s32.totalorder %s16, 1
      %p88 = por %p86, %p87
      %p89 = scmp.ne.s32.totalorder %s80, %s81
      %p90 = scmp.eq.s32.totalorder %s16, 0
      %p91 = por %p89, %p90
      %p92 = scmp.ne.s32.totalorder %s80, %s81
      %p93 = scmp.eq.s32.totalorder %s17, 1
      %p94 = por %p92, %p93
      %p96 = scmp.ne.s32.totalorder %s81, %s95
      %p97 = scmp.eq.s32.totalorder %s17, 0
      %p98 = por %p96, %p97
      %s99 = ssub.s32 %s18, %s30
      %s100 = ssub.s32 %s19, %s26
      %s101 = sor.u32 %s99, %s100
      %p102 = scmp.eq.s32.totalorder %s101, 0
      %s104 = sadd.s32 %s103, 1
      %s105 = scalar_select %p102, %s103, %s104
      %p108 = pneg %p102
      %p109 = scmp.eq.s32.totalorder %s11, 1
      %p110 = por %p108, %p109
      %p111 = scmp.ne.s32.totalorder %s103, %s106
      %p112 = scmp.eq.s32.totalorder %s11, 0
      %p113 = por %p111, %p112
      %p114 = scmp.ne.s32.totalorder %s103, %s106
      %p115 = scmp.eq.s32.totalorder %s16, 1
      %p116 = por %p114, %p115
      %p117 = scmp.ne.s32.totalorder %s106, %s107
      %p118 = scmp.eq.s32.totalorder %s16, 0
      %p119 = por %p117, %p118
      %p120 = scmp.ne.s32.totalorder %s106, %s107
      %p121 = scmp.eq.s32.totalorder %s17, 1
      %p122 = por %p120, %p121
      %p124 = scmp.ne.s32.totalorder %s107, %s123
      %p125 = scmp.eq.s32.totalorder %s17, 0
      %p126 = por %p124, %p125
      %p127 = scmp.le.s32.totalorder 1, %s11
      %p128 = scmp.lt.s32.totalorder %s11, 3
      %p129 = pnand %p127, %p128
      %p130 = pneg %p129
      // Predicated region
      $region9: #{a_call__.1} parent=5 // pred_check
        _
      $region10: #{a_call__.1} parent=5 // pred_check_branch
        %132 = sbr.rel (%p129) target = $region12
      $region11: #{a_call__.1} parent=5 // pred_region
        %s133 = ssub.s32 %s11, 1
        // Predicated region
        $region13: #{a_call__.1} parent=11 // pred_check
          %p134 = pneg %p70
        $region14: #{a_call__.1} parent=11 // pred_check_branch
          %136 = sbr.rel (%p134) target = $region16
        $region15: #{a_call__.1} parent=11 // pred_region
          %s138 = ssub.s32 16384, 16384
          %139 = vsyncadd [#allocation3], %s138
          %s140 = sshll.u32 [#allocation2], 4
          %s141 = int_to_ptr.vmem [resolvable:$true] %s140
          %146 = dma.hbm_to_vmem [thread:$0]  %s1, 16384, %s141, [#allocation3], 512, 512, 32
        $region16: #{a_call__.1} parent=11 // pred_fallthru
          _
        // Predicated region
        $region17: #{a_call__.1} parent=11 // pred_check
          %p147 = pneg %p91
        $region18: #{a_call__.1} parent=11 // pred_check_branch
          %149 = sbr.rel (%p147) target = $region20
        $region19: #{a_call__.1} parent=11 // pred_region
          %s151 = ssub.s32 4096, 4096
          %152 = vsyncadd [#allocation5], %s151
          %s153 = sshll.u32 [#allocation4], 4
          %s154 = int_to_ptr.vmem [resolvable:$true] %s153
          %159 = dma.hbm_to_vmem [thread:$0]  %s2, 4096, %s154, [#allocation5], 128, 128, 8
        $region20: #{a_call__.1} parent=11 // pred_fallthru
          _
      $region12: #{a_call__.1} parent=5 // pred_fallthru
        _
      %p160 = scmp.lt.s32.totalorder %s11, 2
      // Predicated region
      $region21: #{a_call__.1} parent=5 // pred_check
        %p161 = pneg %p160
      $region22: #{a_call__.1} parent=5 // pred_check_branch
        %163 = sbr.rel (%p161) target = $region24
      $region23: #{a_call__.1} parent=5 // pred_region
        // Predicated region
        $region25: #{a_call__.1} parent=23 // pred_check
          %p164 = pneg %p43
        $region26: #{a_call__.1} parent=23 // pred_check_branch
          %166 = sbr.rel (%p164) target = $region28
        $region27: #{a_call__.1} parent=23 // pred_region
          %p167 = scmp.lt.s32.totalorder %s18, 1
          %s168 = scalar_select %p167, %s18, 1
          %s169 = smul.addr %s168, 4
          %s170 = smul.addr %s169, 8
          %s171 = scalar_lea.vmem %s0, %s170
        $region28: #{a_call__.1} parent=23 // pred_fallthru
          _
      $region24: #{a_call__.1} parent=5 // pred_fallthru
        _
      %p172 = scmp.le.s32.totalorder 1, %s11
      %p173 = scmp.lt.s32.totalorder %s11, 3
      %p174 = pnand %p172, %p173
      %p175 = pneg %p174
      // Predicated region
      $region29: #{a_call__.1} parent=5 // pred_check
        _
      $region30: #{a_call__.1} parent=5 // pred_check_branch
        %177 = sbr.rel (%p174) target = $region32
      $region31: #{a_call__.1} parent=5 // pred_region
        %s178 = ssub.s32 %s11, 1
        // Predicated region
        $region33: #{a_call__.1} parent=31 // pred_check
          %p179 = pneg %p70
        $region34: #{a_call__.1} parent=31 // pred_check_branch
          %181 = sbr.rel (%p179) target = $region36
        $region35: #{a_call__.1} parent=31 // pred_region
          %182 = dma.done [#allocation3], 16384
        $region36: #{a_call__.1} parent=31 // pred_fallthru
          _
        // Predicated region
        $region37: #{a_call__.1} parent=31 // pred_check
          %p183 = pneg %p91
        $region38: #{a_call__.1} parent=31 // pred_check_branch
          %185 = sbr.rel (%p183) target = $region40
        $region39: #{a_call__.1} parent=31 // pred_region
          %186 = dma.done [#allocation5], 4096
        $region40: #{a_call__.1} parent=31 // pred_fallthru
          _
        %p187 = scmp.lt.s32.totalorder %s20, 1
        %s188 = scalar_select %p187, %s20, 1
        %s189 = smul.addr %s188, 4
        %s190 = smul.addr %s189, 8
        %s191 = scalar_lea.vmem %s0, %s190
        %p192 = pneg %p49
        %p193 = pneg %p46
        %p194 = pneg %p70
        %p195 = pneg %p67
        %p196 = pneg %p91
        %p197 = pneg %p88
        %p198 = pneg %p119
        %p199 = pneg %p116
        %s200 = smul.u32 3, %s21
        %p201 = scmp.lt.s32.totalorder %s20, 1
        %s202 = scalar_select %p201, %s20, 1
        %p203 = scmp.lt.s32.totalorder %s200, 2
        %s204 = scalar_select %p203, %s200, 2
        %s205 = smul.addr %s202, 3
        %s206 = sadd.s32 %s204, %s205
        %s207 = smul.addr %s206, 8
        %s208 = scalar_lea.vmem %s3, %s207
        %p209 = scmp.lt.s32.totalorder %s20, 1
        %s210 = scalar_select %p209, %s20, 1
        %s211 = smul.addr %s210, 4
        %s212 = smul.addr %s211, 8
        %s213 = scalar_lea.vmem %s0, %s212
        %s214 = smul.u32 3, %s21
        %p215 = scmp.lt.s32.totalorder %s20, 1
        %s216 = scalar_select %p215, %s20, 1
        %p217 = scmp.lt.s32.totalorder %s214, 2
        %s218 = scalar_select %p217, %s214, 2
        %s219 = smul.addr %s216, 3
        %s220 = sadd.s32 %s218, %s219
        %s221 = smul.addr %s220, 8
        %s222 = scalar_lea.vmem %s3, %s221
        %s223 = smul.u32 3, %s21
        %s224 = smul.u32 %s21, 24
        %s225 = scalar_lea.vmem %s213, %s224
        %v226 = vld [vmem:[%s225] sm:$0xff]
        %v227 = vld [vmem:[%s225 + $0x8] sm:$0xff]
        %v228 = vld [vmem:[%s225 + $0x10] sm:$0xff]
        %s229 = sadd.s32 %s224, 1
        %s230 = scalar_lea.vmem %s213, %s229
        %v231 = vld [vmem:[%s230] sm:$0xff]
        %v232 = vld [vmem:[%s230 + $0x8] sm:$0xff]
        %v233 = vld [vmem:[%s230 + $0x10] sm:$0xff]
        %s234 = sadd.s32 %s224, 2
        %s235 = scalar_lea.vmem %s213, %s234
        %v236 = vld [vmem:[%s235] sm:$0xff]
        %v237 = vld [vmem:[%s235 + $0x8] sm:$0xff]
        %v238 = vld [vmem:[%s235 + $0x10] sm:$0xff]
        %s239 = sadd.s32 %s224, 3
        %s240 = scalar_lea.vmem %s213, %s239
        %v241 = vld [vmem:[%s240] sm:$0xff]
        %v242 = vld [vmem:[%s240 + $0x8] sm:$0xff]
        %v243 = vld [vmem:[%s240 + $0x10] sm:$0xff]
        %247 = vrot.lane.b32.xlu0 %v231, 64
        %v248 = vpop.permute.xlu0 %247
        %249 = vrot.lane.b32.xlu0 %v232, 64
        %v250 = vpop.permute.xlu0 %249
        %251 = vrot.lane.b32.xlu0 %v233, 64
        %v252 = vpop.permute.xlu0 %251
        %259 = vrot.lane.b32.xlu0 %v241, 64
        %v260 = vpop.permute.xlu0 %259
        %261 = vrot.lane.b32.xlu0 %v242, 64
        %v262 = vpop.permute.xlu0 %261
        %263 = vrot.lane.b32.xlu0 %v243, 64
        %v264 = vpop.permute.xlu0 %263
        %vm268 = vcmask 523264
        %v269 = vsel %vm268, %v226, %v248
        %v270 = vsel %vm268, %v227, %v250
        %v271 = vsel %vm268, %v228, %v252
        %v272 = vsel %vm268, %v236, %v260
        %v273 = vsel %vm268, %v237, %v262
        %v274 = vsel %vm268, %v238, %v264
        %v275 = vld [vmem:[#allocation2] sm:$0xff]
        %v276 = vld [vmem:[#allocation2 + $0x8] sm:$0xff]
        %v277 = vld [vmem:[#allocation2 + $0x10] sm:$0xff]
        %v278 = vld [vmem:[#allocation2 + $0x18] sm:$0xff]
        %v279 = vld [vmem:[#allocation2 + $0x20] sm:$0xff]
        %v280 = vld [vmem:[#allocation2 + $0x28] sm:$0xff]
        %v281 = vld [vmem:[#allocation2 + $0x30] sm:$0xff]
        %v282 = vld [vmem:[#allocation2 + $0x38] sm:$0xff]
        %v283 = vld [vmem:[#allocation2 + $0x40] sm:$0xff]
        %v284 = vld [vmem:[#allocation2 + $0x48] sm:$0xff]
        %v285 = vld [vmem:[#allocation2 + $0x50] sm:$0xff]
        %v286 = vld [vmem:[#allocation2 + $0x58] sm:$0xff]
        %v287 = vld [vmem:[#allocation2 + $0x60] sm:$0xff]
        %v288 = vld [vmem:[#allocation2 + $0x68] sm:$0xff]
        %v289 = vld [vmem:[#allocation2 + $0x70] sm:$0xff]
        %v290 = vld [vmem:[#allocation2 + $0x78] sm:$0xff]
        %v291 = vld [vmem:[#allocation2 + $0x80] sm:$0xff]
        %v292 = vld [vmem:[#allocation2 + $0x88] sm:$0xff]
        %v293 = vld [vmem:[#allocation2 + $0x90] sm:$0xff]
        %v294 = vld [vmem:[#allocation2 + $0x98] sm:$0xff]
        %v295 = vld [vmem:[#allocation2 + $0xa0] sm:$0xff]
        %v296 = vld [vmem:[#allocation2 + $0xa8] sm:$0xff]
        %v297 = vld [vmem:[#allocation2 + $0xb0] sm:$0xff]
        %v298 = vld [vmem:[#allocation2 + $0xb8] sm:$0xff]
        %v299 = vld [vmem:[#allocation2 + $0xc0] sm:$0xff]
        %v300 = vld [vmem:[#allocation2 + $0xc8] sm:$0xff]
        %v301 = vld [vmem:[#allocation2 + $0xd0] sm:$0xff]
        %v302 = vld [vmem:[#allocation2 + $0xd8] sm:$0xff]
        %v303 = vld [vmem:[#allocation2 + $0xe0] sm:$0xff]
        %v304 = vld [vmem:[#allocation2 + $0xe8] sm:$0xff]
        %v305 = vld [vmem:[#allocation2 + $0xf0] sm:$0xff]
        %v306 = vld [vmem:[#allocation2 + $0xf8] sm:$0xff]
        %v307 = vld [vmem:[#allocation2 + $0x100] sm:$0xff]
        %v308 = vld [vmem:[#allocation2 + $0x108] sm:$0xff]
        %v309 = vld [vmem:[#allocation2 + $0x110] sm:$0xff]
        %v310 = vld [vmem:[#allocation2 + $0x118] sm:$0xff]
        %v311 = vld [vmem:[#allocation2 + $0x120] sm:$0xff]
        %v312 = vld [vmem:[#allocation2 + $0x128] sm:$0xff]
        %v313 = vld [vmem:[#allocation2 + $0x130] sm:$0xff]
        %v314 = vld [vmem:[#allocation2 + $0x138] sm:$0xff]
        %v315 = vld [vmem:[#allocation2 + $0x140] sm:$0xff]
        %v316 = vld [vmem:[#allocation2 + $0x148] sm:$0xff]
        %v317 = vld [vmem:[#allocation2 + $0x150] sm:$0xff]
        %v318 = vld [vmem:[#allocation2 + $0x158] sm:$0xff]
        %v319 = vld [vmem:[#allocation2 + $0x160] sm:$0xff]
        %v320 = vld [vmem:[#allocation2 + $0x168] sm:$0xff]
        %v321 = vld [vmem:[#allocation2 + $0x170] sm:$0xff]
        %v322 = vld [vmem:[#allocation2 + $0x178] sm:$0xff]
        %v323 = vld [vmem:[#allocation2 + $0x180] sm:$0xff]
        %v324 = vld [vmem:[#allocation2 + $0x188] sm:$0xff]
        %v325 = vld [vmem:[#allocation2 + $0x190] sm:$0xff]
        %v326 = vld [vmem:[#allocation2 + $0x198] sm:$0xff]
        %v327 = vld [vmem:[#allocation2 + $0x1a0] sm:$0xff]
        %v328 = vld [vmem:[#allocation2 + $0x1a8] sm:$0xff]
        %v329 = vld [vmem:[#allocation2 + $0x1b0] sm:$0xff]
        %v330 = vld [vmem:[#allocation2 + $0x1b8] sm:$0xff]
        %v331 = vld [vmem:[#allocation2 + $0x1c0] sm:$0xff]
        %v332 = vld [vmem:[#allocation2 + $0x1c8] sm:$0xff]
        %v333 = vld [vmem:[#allocation2 + $0x1d0] sm:$0xff]
        %v334 = vld [vmem:[#allocation2 + $0x1d8] sm:$0xff]
        %v335 = vld [vmem:[#allocation2 + $0x1e0] sm:$0xff]
        %v336 = vld [vmem:[#allocation2 + $0x1e8] sm:$0xff]
        %v337 = vld [vmem:[#allocation2 + $0x1f0] sm:$0xff]
        %v338 = vld [vmem:[#allocation2 + $0x1f8] sm:$0xff]
        %v339 = vld [vmem:[#allocation2 + $0x200] sm:$0xff]
        %v340 = vld [vmem:[#allocation2 + $0x208] sm:$0xff]
        %v341 = vld [vmem:[#allocation2 + $0x210] sm:$0xff]
        %v342 = vld [vmem:[#allocation2 + $0x218] sm:$0xff]
        %v343 = vld [vmem:[#allocation2 + $0x220] sm:$0xff]
        %v344 = vld [vmem:[#allocation2 + $0x228] sm:$0xff]
        %v345 = vld [vmem:[#allocation2 + $0x230] sm:$0xff]
        %v346 = vld [vmem:[#allocation2 + $0x238] sm:$0xff]
        %v347 = vld [vmem:[#allocation2 + $0x240] sm:$0xff]
        %v348 = vld [vmem:[#allocation2 + $0x248] sm:$0xff]
        %v349 = vld [vmem:[#allocation2 + $0x250] sm:$0xff]
        %v350 = vld [vmem:[#allocation2 + $0x258] sm:$0xff]
        %v351 = vld [vmem:[#allocation2 + $0x260] sm:$0xff]
        %v352 = vld [vmem:[#allocation2 + $0x268] sm:$0xff]
        %v353 = vld [vmem:[#allocation2 + $0x270] sm:$0xff]
        %v354 = vld [vmem:[#allocation2 + $0x278] sm:$0xff]
        %v355 = vld [vmem:[#allocation2 + $0x280] sm:$0xff]
        %v356 = vld [vmem:[#allocation2 + $0x288] sm:$0xff]
        %v357 = vld [vmem:[#allocation2 + $0x290] sm:$0xff]
        %v358 = vld [vmem:[#allocation2 + $0x298] sm:$0xff]
        %v359 = vld [vmem:[#allocation2 + $0x2a0] sm:$0xff]
        %v360 = vld [vmem:[#allocation2 + $0x2a8] sm:$0xff]
        %v361 = vld [vmem:[#allocation2 + $0x2b0] sm:$0xff]
        %v362 = vld [vmem:[#allocation2 + $0x2b8] sm:$0xff]
        %v363 = vld [vmem:[#allocation2 + $0x2c0] sm:$0xff]
        %v364 = vld [vmem:[#allocation2 + $0x2c8] sm:$0xff]
        %v365 = vld [vmem:[#allocation2 + $0x2d0] sm:$0xff]
        %v366 = vld [vmem:[#allocation2 + $0x2d8] sm:$0xff]
        %v367 = vld [vmem:[#allocation2 + $0x2e0] sm:$0xff]
        %v368 = vld [vmem:[#allocation2 + $0x2e8] sm:$0xff]
        %v369 = vld [vmem:[#allocation2 + $0x2f0] sm:$0xff]
        %v370 = vld [vmem:[#allocation2 + $0x2f8] sm:$0xff]
        %v371 = vld [vmem:[#allocation2 + $0x300] sm:$0xff]
        %v372 = vld [vmem:[#allocation2 + $0x308] sm:$0xff]
        %v373 = vld [vmem:[#allocation2 + $0x310] sm:$0xff]
        %v374 = vld [vmem:[#allocation2 + $0x318] sm:$0xff]
        %v375 = vld [vmem:[#allocation2 + $0x320] sm:$0xff]
        %v376 = vld [vmem:[#allocation2 + $0x328] sm:$0xff]
        %v377 = vld [vmem:[#allocation2 + $0x330] sm:$0xff]
        %v378 = vld [vmem:[#allocation2 + $0x338] sm:$0xff]
        %v379 = vld [vmem:[#allocation2 + $0x340] sm:$0xff]
        %v380 = vld [vmem:[#allocation2 + $0x348] sm:$0xff]
        %v381 = vld [vmem:[#allocation2 + $0x350] sm:$0xff]
        %v382 = vld [vmem:[#allocation2 + $0x358] sm:$0xff]
        %v383 = vld [vmem:[#allocation2 + $0x360] sm:$0xff]
        %v384 = vld [vmem:[#allocation2 + $0x368] sm:$0xff]
        %v385 = vld [vmem:[#allocation2 + $0x370] sm:$0xff]
        %v386 = vld [vmem:[#allocation2 + $0x378] sm:$0xff]
        %v387 = vld [vmem:[#allocation2 + $0x380] sm:$0xff]
        %v388 = vld [vmem:[#allocation2 + $0x388] sm:$0xff]
        %v389 = vld [vmem:[#allocation2 + $0x390] sm:$0xff]
        %v390 = vld [vmem:[#allocation2 + $0x398] sm:$0xff]
        %v391 = vld [vmem:[#allocation2 + $0x3a0] sm:$0xff]
        %v392 = vld [vmem:[#allocation2 + $0x3a8] sm:$0xff]
        %v393 = vld [vmem:[#allocation2 + $0x3b0] sm:$0xff]
        %v394 = vld [vmem:[#allocation2 + $0x3b8] sm:$0xff]
        %v395 = vld [vmem:[#allocation2 + $0x3c0] sm:$0xff]
        %v396 = vld [vmem:[#allocation2 + $0x3c8] sm:$0xff]
        %v397 = vld [vmem:[#allocation2 + $0x3d0] sm:$0xff]
        %v398 = vld [vmem:[#allocation2 + $0x3d8] sm:$0xff]
        %v399 = vld [vmem:[#allocation2 + $0x3e0] sm:$0xff]
        %v400 = vld [vmem:[#allocation2 + $0x3e8] sm:$0xff]
        %v401 = vld [vmem:[#allocation2 + $0x3f0] sm:$0xff]
        %v402 = vld [vmem:[#allocation2 + $0x3f8] sm:$0xff]
        %403 = vmatprep.subr.mxu0 %v336
        %404 = vmatpush1.msra.mxu0 %v335
        %405 = vmatprep.subr.mxu0 %v332
        %406 = vmatpush1.msra.mxu0 %v331
        %407 = vmatprep.subr.mxu0 %v328
        %408 = vmatpush1.msra.mxu0 %v327
        %409 = vmatprep.subr.mxu0 %v324
        %410 = vmatpush1.msra.mxu0 %v323
        %411 = vmatprep.subr.mxu0 %v320
        %412 = vmatpush1.msra.mxu0 %v319
        %413 = vmatprep.subr.mxu0 %v316
        %414 = vmatpush1.msra.mxu0 %v315
        %415 = vmatprep.subr.mxu0 %v312
        %416 = vmatpush1.msra.mxu0 %v311
        %417 = vmatprep.subr.mxu0 %v308
        %418 = vmatpush1.msra.mxu0 %v307
        %419 = vmatprep.subr.mxu0 %v304
        %420 = vmatpush1.msra.mxu0 %v303
        %421 = vmatprep.subr.mxu0 %v300
        %422 = vmatpush1.msra.mxu0 %v299
        %423 = vmatprep.subr.mxu0 %v296
        %424 = vmatpush1.msra.mxu0 %v295
        %425 = vmatprep.subr.mxu0 %v292
        %426 = vmatpush1.msra.mxu0 %v291
        %427 = vmatprep.subr.mxu0 %v288
        %428 = vmatpush1.msra.mxu0 %v287
        %429 = vmatprep.subr.mxu0 %v284
        %430 = vmatpush1.msra.mxu0 %v283
        %431 = vmatprep.subr.mxu0 %v280
        %432 = vmatpush1.msra.mxu0 %v279
        %433 = vmatprep.subr.mxu0 %v276
        %434 = vmatpush1.msra.mxu0 %v275
        %435 = vmatprep.subr.mxu0 %v400
        %436 = vmatpush2.msra.mxu0 %v399
        %437 = vmatprep.subr.mxu0 %v396
        %438 = vmatpush2.msra.mxu0 %v395
        %439 = vmatprep.subr.mxu0 %v392
        %440 = vmatpush2.msra.mxu0 %v391
        %441 = vmatprep.subr.mxu0 %v388
        %442 = vmatpush2.msra.mxu0 %v387
        %443 = vmatprep.subr.mxu0 %v384
        %444 = vmatpush2.msra.mxu0 %v383
        %445 = vmatprep.subr.mxu0 %v380
        %446 = vmatpush2.msra.mxu0 %v379
        %447 = vmatprep.subr.mxu0 %v376
        %448 = vmatpush2.msra.mxu0 %v375
        %449 = vmatprep.subr.mxu0 %v372
        %450 = vmatpush2.msra.mxu0 %v371
        %451 = vmatprep.subr.mxu0 %v368
        %452 = vmatpush2.msra.mxu0 %v367
        %453 = vmatprep.subr.mxu0 %v364
        %454 = vmatpush2.msra.mxu0 %v363
        %455 = vmatprep.subr.mxu0 %v360
        %456 = vmatpush2.msra.mxu0 %v359
        %457 = vmatprep.subr.mxu0 %v356
        %458 = vmatpush2.msra.mxu0 %v355
        %459 = vmatprep.subr.mxu0 %v352
        %460 = vmatpush2.msra.mxu0 %v351
        %461 = vmatprep.subr.mxu0 %v348
        %462 = vmatpush2.msra.mxu0 %v347
        %463 = vmatprep.subr.mxu0 %v344
        %464 = vmatpush2.msra.mxu0 %v343
        %465 = vmatprep.subr.mxu0 %v340
        %466 = vmatpush2.msra.mxu0 %v339
        %467 = vmatprep.mubr.f32.mxu0 %v272
        %468 = vmatmul.mubr.f32.gmra.mxu0 %v269
        %v469 = vpop.f32.mrf.mxu0
        %v470 = vadd.f32 0.0, %v469
        %v471 = vpop.f32.mrf.mxu0
        %v472 = vadd.f32 0.0, %v471
        %473 = vmatprep.mubr.f32.mxu0 %v273
        %474 = vmatmul.mubr.f32.gmra.mxu0 %v270
        %v475 = vpop.f32.mrf.mxu0
        %v476 = vadd.f32 0.0, %v475
        %v477 = vpop.f32.mrf.mxu0
        %v478 = vadd.f32 0.0, %v477
        %479 = vmatprep.mubr.f32.mxu0 %v274
        %480 = vmatmul.mubr.f32.gmra.mxu0 %v271
        %v481 = vpop.f32.mrf.mxu0
        %v482 = vadd.f32 0.0, %v481
        %v483 = vpop.f32.mrf.mxu0
        %v484 = vadd.f32 0.0, %v483
        %485 = vdwg.mxu0
        %486 = vmatprep.subr.mxu0 %v338
        %487 = vmatpush1.msra.mxu0 %v337
        %488 = vmatprep.subr.mxu0 %v334
        %489 = vmatpush1.msra.mxu0 %v333
        %490 = vmatprep.subr.mxu0 %v330
        %491 = vmatpush1.msra.mxu0 %v329
        %492 = vmatprep.subr.mxu0 %v326
        %493 = vmatpush1.msra.mxu0 %v325
        %494 = vmatprep.subr.mxu0 %v322
        %495 = vmatpush1.msra.mxu0 %v321
        %496 = vmatprep.subr.mxu0 %v318
        %497 = vmatpush1.msra.mxu0 %v317
        %498 = vmatprep.subr.mxu0 %v314
        %499 = vmatpush1.msra.mxu0 %v313
        %500 = vmatprep.subr.mxu0 %v310
        %501 = vmatpush1.msra.mxu0 %v309
        %502 = vmatprep.subr.mxu0 %v306
        %503 = vmatpush1.msra.mxu0 %v305
        %504 = vmatprep.subr.mxu0 %v302
        %505 = vmatpush1.msra.mxu0 %v301
        %506 = vmatprep.subr.mxu0 %v298
        %507 = vmatpush1.msra.mxu0 %v297
        %508 = vmatprep.subr.mxu0 %v294
        %509 = vmatpush1.msra.mxu0 %v293
        %510 = vmatprep.subr.mxu0 %v290
        %511 = vmatpush1.msra.mxu0 %v289
        %512 = vmatprep.subr.mxu0 %v286
        %513 = vmatpush1.msra.mxu0 %v285
        %514 = vmatprep.subr.mxu0 %v282
        %515 = vmatpush1.msra.mxu0 %v281
        %516 = vmatprep.subr.mxu0 %v278
        %517 = vmatpush1.msra.mxu0 %v277
        %518 = vmatprep.subr.mxu0 %v402
        %519 = vmatpush2.msra.mxu0 %v401
        %520 = vmatprep.subr.mxu0 %v398
        %521 = vmatpush2.msra.mxu0 %v397
        %522 = vmatprep.subr.mxu0 %v394
        %523 = vmatpush2.msra.mxu0 %v393
        %524 = vmatprep.subr.mxu0 %v390
        %525 = vmatpush2.msra.mxu0 %v389
        %526 = vmatprep.subr.mxu0 %v386
        %527 = vmatpush2.msra.mxu0 %v385
        %528 = vmatprep.subr.mxu0 %v382
        %529 = vmatpush2.msra.mxu0 %v381
        %530 = vmatprep.subr.mxu0 %v378
        %531 = vmatpush2.msra.mxu0 %v377
        %532 = vmatprep.subr.mxu0 %v374
        %533 = vmatpush2.msra.mxu0 %v373
        %534 = vmatprep.subr.mxu0 %v370
        %535 = vmatpush2.msra.mxu0 %v369
        %536 = vmatprep.subr.mxu0 %v366
        %537 = vmatpush2.msra.mxu0 %v365
        %538 = vmatprep.subr.mxu0 %v362
        %539 = vmatpush2.msra.mxu0 %v361
        %540 = vmatprep.subr.mxu0 %v358
        %541 = vmatpush2.msra.mxu0 %v357
        %542 = vmatprep.subr.mxu0 %v354
        %543 = vmatpush2.msra.mxu0 %v353
        %544 = vmatprep.subr.mxu0 %v350
        %545 = vmatpush2.msra.mxu0 %v349
        %546 = vmatprep.subr.mxu0 %v346
        %547 = vmatpush2.msra.mxu0 %v345
        %548 = vmatprep.subr.mxu0 %v342
        %549 = vmatpush2.msra.mxu0 %v341
        %550 = vmatprep.mubr.f32.mxu0 %v272
        %551 = vmatmul.mubr.f32.gmra.mxu0 %v269
        %v552 = vpop.f32.mrf.mxu0
        %v553 = vadd.f32 0.0, %v552
        %v554 = vpop.f32.mrf.mxu0
        %v555 = vadd.f32 0.0, %v554
        %556 = vmatprep.mubr.f32.mxu0 %v273
        %557 = vmatmul.mubr.f32.gmra.mxu0 %v270
        %v558 = vpop.f32.mrf.mxu0
        %v559 = vadd.f32 0.0, %v558
        %v560 = vpop.f32.mrf.mxu0
        %v561 = vadd.f32 0.0, %v560
        %562 = vmatprep.mubr.f32.mxu0 %v274
        %563 = vmatmul.mubr.f32.gmra.mxu0 %v271
        %v564 = vpop.f32.mrf.mxu0
        %v565 = vadd.f32 0.0, %v564
        %v566 = vpop.f32.mrf.mxu0
        %v567 = vadd.f32 0.0, %v566
        %568 = vdwg.mxu0
        %v569 = vmul.f32 %v470, %v470
        %v570 = vmul.f32 %v472, %v472
        %v571 = vmul.f32 %v476, %v476
        %v572 = vmul.f32 %v478, %v478
        %v573 = vmul.f32 %v482, %v482
        %v574 = vmul.f32 %v484, %v484
        %v575 = vmul.f32 %v553, %v553
        %v576 = vmul.f32 %v555, %v555
        %v577 = vmul.f32 %v559, %v559
        %v578 = vmul.f32 %v561, %v561
        %v579 = vmul.f32 %v565, %v565
        %v580 = vmul.f32 %v567, %v567
        %v581 = vadd.f32 %v569, %v575
        %v582 = vadd.f32 %v570, %v576
        %v583 = vadd.f32 %v571, %v577
        %v584 = vadd.f32 %v572, %v578
        %v585 = vadd.f32 %v573, %v579
        %v586 = vadd.f32 %v574, %v580
        %v587 = vld [vmem:[#allocation4] sm:$0xff]
        %v588 = vld [vmem:[#allocation4 + $0x8] sm:$0xff]
        %v589 = vld [vmem:[#allocation4 + $0x10] sm:$0xff]
        %v590 = vld [vmem:[#allocation4 + $0x18] sm:$0xff]
        %v591 = vld [vmem:[#allocation4 + $0x20] sm:$0xff]
        %v592 = vld [vmem:[#allocation4 + $0x28] sm:$0xff]
        %v593 = vld [vmem:[#allocation4 + $0x30] sm:$0xff]
        %v594 = vld [vmem:[#allocation4 + $0x38] sm:$0xff]
        %v595 = vld [vmem:[#allocation4 + $0x40] sm:$0xff]
        %v596 = vld [vmem:[#allocation4 + $0x48] sm:$0xff]
        %v597 = vld [vmem:[#allocation4 + $0x50] sm:$0xff]
        %v598 = vld [vmem:[#allocation4 + $0x58] sm:$0xff]
        %v599 = vld [vmem:[#allocation4 + $0x60] sm:$0xff]
        %v600 = vld [vmem:[#allocation4 + $0x68] sm:$0xff]
        %v601 = vld [vmem:[#allocation4 + $0x70] sm:$0xff]
        %v602 = vld [vmem:[#allocation4 + $0x78] sm:$0xff]
        %v603 = vld [vmem:[#allocation4 + $0x80] sm:$0xff]
        %v604 = vld [vmem:[#allocation4 + $0x88] sm:$0xff]
        %v605 = vld [vmem:[#allocation4 + $0x90] sm:$0xff]
        %v606 = vld [vmem:[#allocation4 + $0x98] sm:$0xff]
        %v607 = vld [vmem:[#allocation4 + $0xa0] sm:$0xff]
        %v608 = vld [vmem:[#allocation4 + $0xa8] sm:$0xff]
        %v609 = vld [vmem:[#allocation4 + $0xb0] sm:$0xff]
        %v610 = vld [vmem:[#allocation4 + $0xb8] sm:$0xff]
        %v611 = vld [vmem:[#allocation4 + $0xc0] sm:$0xff]
        %v612 = vld [vmem:[#allocation4 + $0xc8] sm:$0xff]
        %v613 = vld [vmem:[#allocation4 + $0xd0] sm:$0xff]
        %v614 = vld [vmem:[#allocation4 + $0xd8] sm:$0xff]
        %v615 = vld [vmem:[#allocation4 + $0xe0] sm:$0xff]
        %v616 = vld [vmem:[#allocation4 + $0xe8] sm:$0xff]
        %v617 = vld [vmem:[#allocation4 + $0xf0] sm:$0xff]
        %v618 = vld [vmem:[#allocation4 + $0xf8] sm:$0xff]
        %619 = vmatprep.subr.mxu0 0.0
        %620 = vmatpush1.msra.mxu0 %v602
        %621 = vmatprep.subr.mxu0 0.0
        %622 = vmatpush1.msra.mxu0 %v601
        %623 = vmatprep.subr.mxu0 0.0
        %624 = vmatpush1.msra.mxu0 %v600
        %625 = vmatprep.subr.mxu0 0.0
        %626 = vmatpush1.msra.mxu0 %v599
        %627 = vmatprep.subr.mxu0 0.0
        %628 = vmatpush1.msra.mxu0 %v598
        %629 = vmatprep.subr.mxu0 0.0
        %630 = vmatpush1.msra.mxu0 %v597
        %631 = vmatprep.subr.mxu0 0.0
        %632 = vmatpush1.msra.mxu0 %v596
        %633 = vmatprep.subr.mxu0 0.0
        %634 = vmatpush1.msra.mxu0 %v595
        %635 = vmatprep.subr.mxu0 0.0
        %636 = vmatpush1.msra.mxu0 %v594
        %637 = vmatprep.subr.mxu0 0.0
        %638 = vmatpush1.msra.mxu0 %v593
        %639 = vmatprep.subr.mxu0 0.0
        %640 = vmatpush1.msra.mxu0 %v592
        %641 = vmatprep.subr.mxu0 0.0
        %642 = vmatpush1.msra.mxu0 %v591
        %643 = vmatprep.subr.mxu0 0.0
        %644 = vmatpush1.msra.mxu0 %v590
        %645 = vmatprep.subr.mxu0 0.0
        %646 = vmatpush1.msra.mxu0 %v589
        %647 = vmatprep.subr.mxu0 0.0
        %648 = vmatpush1.msra.mxu0 %v588
        %649 = vmatprep.subr.mxu0 0.0
        %650 = vmatpush1.msra.mxu0 %v587
        %651 = vmatprep.subr.mxu0 0.0
        %652 = vmatpush2.msra.mxu0 %v618
        %653 = vmatprep.subr.mxu0 0.0
        %654 = vmatpush2.msra.mxu0 %v617
        %655 = vmatprep.subr.mxu0 0.0
        %656 = vmatpush2.msra.mxu0 %v616
        %657 = vmatprep.subr.mxu0 0.0
        %658 = vmatpush2.msra.mxu0 %v615
        %659 = vmatprep.subr.mxu0 0.0
        %660 = vmatpush2.msra.mxu0 %v614
        %661 = vmatprep.subr.mxu0 0.0
        %662 = vmatpush2.msra.mxu0 %v613
        %663 = vmatprep.subr.mxu0 0.0
        %664 = vmatpush2.msra.mxu0 %v612
        %665 = vmatprep.subr.mxu0 0.0
        %666 = vmatpush2.msra.mxu0 %v611
        %667 = vmatprep.subr.mxu0 0.0
        %668 = vmatpush2.msra.mxu0 %v610
        %669 = vmatprep.subr.mxu0 0.0
        %670 = vmatpush2.msra.mxu0 %v609
        %671 = vmatprep.subr.mxu0 0.0
        %672 = vmatpush2.msra.mxu0 %v608
        %673 = vmatprep.subr.mxu0 0.0
        %674 = vmatpush2.msra.mxu0 %v607
        %675 = vmatprep.subr.mxu0 0.0
        %676 = vmatpush2.msra.mxu0 %v606
        %677 = vmatprep.subr.mxu0 0.0
        %678 = vmatpush2.msra.mxu0 %v605
        %679 = vmatprep.subr.mxu0 0.0
        %680 = vmatpush2.msra.mxu0 %v604
        %681 = vmatprep.subr.mxu0 0.0
        %682 = vmatpush2.msra.mxu0 %v603
        %683 = vmatprep.mubr.f32.mxu0 %v582
        %684 = vmatmul.mubr.f32.gmra.mxu0 %v581
        %v685 = vpop.f32.mrf.mxu0
        %v686 = vadd.f32 0.0, %v685
        %v687 = vpop.f32.mrf.mxu0
        %688 = vmatprep.mubr.f32.mxu0 %v584
        %689 = vmatmul.mubr.f32.gmra.mxu0 %v583
        %v690 = vpop.f32.mrf.mxu0
        %v691 = vadd.f32 0.0, %v690
        %v692 = vpop.f32.mrf.mxu0
        %693 = vmatprep.mubr.f32.mxu0 %v586
        %694 = vmatmul.mubr.f32.gmra.mxu0 %v585
        %v695 = vpop.f32.mrf.mxu0
        %v696 = vadd.f32 0.0, %v695
        %v697 = vpop.f32.mrf.mxu0
        %698 = vdwg.mxu0
        %v699 = vmax.f32 %v686, 1e-10
        %v700 = vmax.f32 %v691, 1e-10
        %v701 = vmax.f32 %v696, 1e-10
        %v702 = vlog2.pop %v699
        %v703 = vmul.f32 %v702, 0.6931472
        %v704 = vlog2.pop %v700
        %v705 = vmul.f32 %v704, 0.6931472
        %v706 = vlog2.pop %v701
        %v707 = vmul.f32 %v706, 0.6931472
        %v708 = vmul.f32 %v703, 4.3429446
        %v709 = vmul.f32 %v705, 4.3429446
        %v710 = vmul.f32 %v707, 4.3429446
        %711 = vst [vmem:[%s222] sm:$0xff] %v708
        %712 = vst [vmem:[%s222 + $0x8] sm:$0xff] %v709
        %713 = vst [vmem:[%s222 + $0x10] sm:$0xff] %v710
        %s714 = smul.u32 3, %s21
        %p715 = scmp.lt.s32.totalorder %s20, 1
        %s716 = scalar_select %p715, %s20, 1
        %p717 = scmp.lt.s32.totalorder %s714, 2
        %s718 = scalar_select %p717, %s714, 2
        %s719 = smul.addr %s716, 3
        %s720 = sadd.s32 %s718, %s719
        %s721 = smul.addr %s720, 8
        %s722 = scalar_lea.vmem %s3, %s721
        // Predicated region
        $region41: #{a_call__.1} parent=31 // pred_check
          %p723 = pneg %p116
        $region42: #{a_call__.1} parent=31 // pred_check_branch
          %725 = sbr.rel (%p723) target = $region44
        $region43: #{a_call__.1} parent=31 // pred_region
          %s726 = smul.u32 3, %s21
        $region44: #{a_call__.1} parent=31 // pred_fallthru
          _
      $region32: #{a_call__.1} parent=5 // pred_fallthru
        _
      %p727 = scmp.le.s32.totalorder 2, %s11
      // Predicated region
      $region45: #{a_call__.1} parent=5 // pred_check
        %p728 = pneg %p727
      $region46: #{a_call__.1} parent=5 // pred_check_branch
        %730 = sbr.rel (%p728) target = $region48
      $region47: #{a_call__.1} parent=5 // pred_region
        %s731 = ssub.s32 %s11, 2
        // Predicated region
        $region49: #{a_call__.1} parent=47 // pred_check
          %p732 = pneg %p122
        $region50: #{a_call__.1} parent=47 // pred_check_branch
          %734 = sbr.rel (%p732) target = $region52
        $region51: #{a_call__.1} parent=47 // pred_region
          %s735 = smul.u32 3, %s23
          %p736 = scmp.lt.s32.totalorder %s22, 1
          %s737 = scalar_select %p736, %s22, 1
          %p738 = scmp.lt.s32.totalorder %s735, 2
          %s739 = scalar_select %p738, %s735, 2
          %s740 = smul.addr %s737, 3
          %s741 = sadd.s32 %s739, %s740
          %s742 = smul.addr %s741, 8
          %s743 = scalar_lea.vmem %s3, %s742
        $region52: #{a_call__.1} parent=47 // pred_fallthru
          _
      $region48: #{a_call__.1} parent=5 // pred_fallthru
        _
    $region6: #{a_call__.1} parent=1 // loop_footer
      %s15 = sadd.s32 1, %s11
    $region7: #{a_call__.1} parent=1 // loop_footer_branch
      %10 = sbr.rel target = $region3
    $region8: #{a_call__.1} parent=1 // loop_exit
      _
    %744 = vsyncpa [#allocation3], 1
    %s745 = scalar_lea.sflag [#allocation3], 1
    %746 = vsyncpa %s745, 1
    %747 = vsyncpa [#allocation5], 1

</llo_original>
